<compile_context>
chip_gen: v7x
topology: tpu7x:2x2x1
jax: 0.10.0
libtpu: 0.0.40
codegen_flags: <defaults>
</compile_context>

<pallas_src>
import jax
import jax.numpy as jnp
from jax import lax
from jax.experimental import pallas as pl
from jax.experimental.pallas import tpu as pltpu


def _round_up(x, m):
    return (x + m - 1) // m * m


def mlp_kernel(x_ref, w1_ref, b1_ref, w2_ref, b2_ref, w3_ref, b3_ref, o_ref):
    # x_ref:  (TB, IN)   natural layout block of the input
    # wN_ref: (out, in)  PyTorch layout, VMEM-resident across grid steps
    # bN_ref: (out, 1)   f32, broadcast along the lane (batch) axis
    # o_ref:  (OUT, TB)  lane-dense output block (batch on lanes)
    x = x_ref[...]

    # fc1 + ReLU:  W1 (10,15) · X (TB,15)ᵀ -> (10, TB).  Contraction on the
    # last dim of both operands (Q·Kᵀ pattern) keeps batch on the lane axis
    # from here on.  Bias-add / ReLU ride in otherwise idle VPU slots.
    h1 = lax.dot_general(w1_ref[...], x, (((1,), (1,)), ((), ())),
                         preferred_element_type=jnp.float32)
    h1 = jnp.maximum(h1 + b1_ref[...], 0.0)

    # fc2 + ReLU:  (5,10) @ (10,TB) -> (5, TB)
    h2 = jnp.dot(w2_ref[...], h1.astype(w2_ref.dtype),
                 preferred_element_type=jnp.float32)
    h2 = jnp.maximum(h2 + b2_ref[...], 0.0)

    # fc3 (no activation):  (3,5) @ (5,TB) -> (3, TB)
    h3 = jnp.dot(w3_ref[...], h2.astype(w3_ref.dtype),
                 preferred_element_type=jnp.float32)
    o_ref[...] = (h3 + b3_ref[...]).astype(o_ref.dtype)


def mlp_forward(x, params, *, batch_tile=512, compute_dtype=jnp.float32):
    """x: [B, in_features]; params: PyTorch layout (W [out, in], b [out])."""
    w1, b1, w2, b2, w3, b3 = params
    B, in_dim = x.shape
    out_dim = w3.shape[0]

    # Batch tile on the 128-lane axis (multiple of 128, default 512 columns).
    tb = _round_up(min(batch_tile, _round_up(B, 128)), 128)
    b_pad = _round_up(B, tb)
    grid = (b_pad // tb,)

    # Keep the natural [B, in] layout; just zero-pad the batch to a tile
    # multiple (padded rows are independent and sliced off below).
    xp = x.astype(compute_dtype)
    if b_pad != B:
        xp = jnp.pad(xp, ((0, b_pad - B), (0, 0)))

    wts = [w.astype(compute_dtype) for w in (w1, w2, w3)]
    # Biases stay f32: the post-matmul epilogue runs on the VPU in f32.
    bs = [b.astype(jnp.float32).reshape(-1, 1) for b in (b1, b2, b3)]

    const = lambda shape: pl.BlockSpec(shape, lambda i: (0, 0))

    yt = pl.pallas_call(
        mlp_kernel,
        out_shape=jax.ShapeDtypeStruct((out_dim, b_pad), x.dtype),
        grid=grid,
        in_specs=[
            pl.BlockSpec((tb, in_dim), lambda i: (i, 0)),   # x: tiled over batch
            const(wts[0].shape), const(bs[0].shape),        # fc1 (VMEM-resident)
            const(wts[1].shape), const(bs[1].shape),        # fc2 (VMEM-resident)
            const(wts[2].shape), const(bs[2].shape),        # fc3 (VMEM-resident)
        ],
        out_specs=pl.BlockSpec((out_dim, tb), lambda i: (0, i)),  # lane-dense
        compiler_params=pltpu.CompilerParams(
            # Batch tiles are independent -> shard grid across TensorCores (v7x).
            dimension_semantics=("parallel",),
        ),
    )(xp, wts[0], bs[0], wts[1], bs[1], wts[2], bs[2])

    # Back to the PyTorch layout [B, out_dim] (tiny 3 x B transpose).
    return yt[:, :B].T


def init_params(key, layers=(15, 10, 5), out_dim=3, dtype=jnp.float32):
    """nn.Linear-style init: W [out, in], b [out], uniform(+-1/sqrt(fan_in))."""
    dims = [(layers[1], layers[0]), (layers[2], layers[1]), (out_dim, layers[2])]
    params = []
    for fan_out, fan_in in dims:
        key, kw, kb = jax.random.split(key, 3)
        bound = 1.0 / jnp.sqrt(fan_in)
        w = jax.random.uniform(kw, (fan_out, fan_in), dtype, -bound, bound)
        b = jax.random.uniform(kb, (fan_out,), dtype, -bound, bound)
        params += [w, b]
    return tuple(params)


if __name__ == "__main__":
    key = jax.random.PRNGKey(0)
    k_x, k_p = jax.random.split(key)

    batch = 8
    layers = (15, 10, 5)

    x = jax.random.normal(k_x, (batch, layers[0]), jnp.float32)
    params = init_params(k_p, layers=layers, out_dim=3)

    # Reference in plain JAX (PyTorch semantics: y = x @ W.T + b).
    w1, b1, w2, b2, w3, b3 = params
    ref = jnp.maximum(x @ w1.T + b1, 0.0)
    ref = jnp.maximum(ref @ w2.T + b2, 0.0)
    ref = ref @ w3.T + b3

    # f32 path.
    y = jax.block_until_ready(mlp_forward(x, params))
    assert y.shape == (batch, 3)
    assert jnp.allclose(y, ref, atol=1e-5, rtol=1e-5)

    # bf16 matmul-input path (halves HBM traffic on v6e/v7x); f32 accumulation.
    y_bf16 = jax.block_until_ready(
        mlp_forward(x, params, compute_dtype=jnp.bfloat16))
    assert y_bf16.shape == (batch, 3)
    assert jnp.allclose(y_bf16, ref, atol=1e-1, rtol=1e-1)

    print("KERNEL_OK")
</pallas_src>

<mosaic_0001>
module attributes {stable_mosaic.version = 11 : i64} {
  func.func @mlp_kernel(%arg0: i32, %arg1: memref<128x15xf32, #tpu.memory_space<vmem>>, %arg2: memref<10x15xf32, #tpu.memory_space<vmem>>, %arg3: memref<10x1xf32, #tpu.memory_space<vmem>>, %arg4: memref<5x10xf32, #tpu.memory_space<vmem>>, %arg5: memref<5x1xf32, #tpu.memory_space<vmem>>, %arg6: memref<3x5xf32, #tpu.memory_space<vmem>>, %arg7: memref<3x1xf32, #tpu.memory_space<vmem>>, %arg8: memref<3x128xf32, #tpu.memory_space<vmem>>) attributes {dimension_semantics = [#tpu.dimension_semantics<parallel>], iteration_bounds = array<i64: 1>, scalar_prefetch = 0 : i64, scratch_operands = 0 : i64, tpu.core_type = #tpu.core_type<tc>, window_params = [{transform_indices = @transform_0, window_bounds = array<i64: 128, 15>}, {pipeline_mode = #tpu.pipeline_mode<synchronous>, transform_indices = @transform_1, window_bounds = array<i64: 10, 15>}, {pipeline_mode = #tpu.pipeline_mode<synchronous>, transform_indices = @transform_2, window_bounds = array<i64: 10, 1>}, {pipeline_mode = #tpu.pipeline_mode<synchronous>, transform_indices = @transform_3, window_bounds = array<i64: 5, 10>}, {pipeline_mode = #tpu.pipeline_mode<synchronous>, transform_indices = @transform_4, window_bounds = array<i64: 5, 1>}, {pipeline_mode = #tpu.pipeline_mode<synchronous>, transform_indices = @transform_5, window_bounds = array<i64: 3, 5>}, {pipeline_mode = #tpu.pipeline_mode<synchronous>, transform_indices = @transform_6, window_bounds = array<i64: 3, 1>}, {transform_indices = @transform_7, window_bounds = array<i64: 3, 128>}]} {
    %c0 = arith.constant 0 : index
    %c0_0 = arith.constant 0 : index
    %0 = vector.load %arg1[%c0, %c0_0] : memref<128x15xf32, #tpu.memory_space<vmem>>, vector<128x15xf32>
    %c0_1 = arith.constant 0 : index
    %c0_2 = arith.constant 0 : index
    %1 = vector.load %arg2[%c0_1, %c0_2] : memref<10x15xf32, #tpu.memory_space<vmem>>, vector<10x15xf32>
    %cst = arith.constant dense<0.000000e+00> : vector<10x128xf32>
    %2 = tpu.matmul %1, %0, %cst {dimension_numbers = #tpu.dot_dimension_numbers<[1], [1], [0], [0], [0, 0, 1, 0], [], []>} : vector<10x15xf32>, vector<128x15xf32>, vector<10x128xf32> -> vector<10x128xf32>
    %c0_3 = arith.constant 0 : index
    %c0_4 = arith.constant 0 : index
    %3 = vector.load %arg3[%c0_3, %c0_4] : memref<10x1xf32, #tpu.memory_space<vmem>>, vector<10x1xf32>
    %4 = vector.broadcast %3 : vector<10x1xf32> to vector<10x128xf32>
    %5 = arith.addf %2, %4 : vector<10x128xf32>
    %cst_5 = arith.constant 0.000000e+00 : f32
    %6 = vector.broadcast %cst_5 : f32 to vector<10x128xf32>
    %7 = arith.maximumf %5, %6 : vector<10x128xf32>
    %c0_6 = arith.constant 0 : index
    %c0_7 = arith.constant 0 : index
    %8 = vector.load %arg4[%c0_6, %c0_7] : memref<5x10xf32, #tpu.memory_space<vmem>>, vector<5x10xf32>
    %cst_8 = arith.constant dense<0.000000e+00> : vector<5x128xf32>
    %9 = tpu.matmul %8, %7, %cst_8 {dimension_numbers = #tpu.dot_dimension_numbers<[1], [0], [0], [1], [0, 0, 1, 1], [], []>} : vector<5x10xf32>, vector<10x128xf32>, vector<5x128xf32> -> vector<5x128xf32>
    %c0_9 = arith.constant 0 : index
    %c0_10 = arith.constant 0 : index
    %10 = vector.load %arg5[%c0_9, %c0_10] : memref<5x1xf32, #tpu.memory_space<vmem>>, vector<5x1xf32>
    %11 = vector.broadcast %10 : vector<5x1xf32> to vector<5x128xf32>
    %12 = arith.addf %9, %11 : vector<5x128xf32>
    %cst_11 = arith.constant 0.000000e+00 : f32
    %13 = vector.broadcast %cst_11 : f32 to vector<5x128xf32>
    %14 = arith.maximumf %12, %13 : vector<5x128xf32>
    %c0_12 = arith.constant 0 : index
    %c0_13 = arith.constant 0 : index
    %15 = vector.load %arg6[%c0_12, %c0_13] : memref<3x5xf32, #tpu.memory_space<vmem>>, vector<3x5xf32>
    %cst_14 = arith.constant dense<0.000000e+00> : vector<3x128xf32>
    %16 = tpu.matmul %15, %14, %cst_14 {dimension_numbers = #tpu.dot_dimension_numbers<[1], [0], [0], [1], [0, 0, 1, 1], [], []>} : vector<3x5xf32>, vector<5x128xf32>, vector<3x128xf32> -> vector<3x128xf32>
    %c0_15 = arith.constant 0 : index
    %c0_16 = arith.constant 0 : index
    %17 = vector.load %arg7[%c0_15, %c0_16] : memref<3x1xf32, #tpu.memory_space<vmem>>, vector<3x1xf32>
    %18 = vector.broadcast %17 : vector<3x1xf32> to vector<3x128xf32>
    %19 = arith.addf %16, %18 : vector<3x128xf32>
    %c0_17 = arith.constant 0 : index
    %c0_18 = arith.constant 0 : index
    %20 = vector.load %arg8[%c0_17, %c0_18] : memref<3x128xf32, #tpu.memory_space<vmem>>, vector<3x128xf32>
    tpu.vector_store %arg8[%c0_17, %c0_18], %19 {strides = array<i32>} : memref<3x128xf32, #tpu.memory_space<vmem>>, vector<3x128xf32>,
    return
  }
  func.func @transform_0(%arg0: i32) -> (i32, i32) {
    %c0_i32 = arith.constant 0 : i32
    %c0_i32_0 = arith.constant 0 : i32
    return %arg0, %c0_i32 : i32, i32
  }
  func.func @transform_1(%arg0: i32) -> (i32, i32) {
    %c0_i32 = arith.constant 0 : i32
    %c0_i32_0 = arith.constant 0 : i32
    %c0_i32_1 = arith.constant 0 : i32
    return %c0_i32, %c0_i32_0 : i32, i32
  }
  func.func @transform_2(%arg0: i32) -> (i32, i32) {
    %c0_i32 = arith.constant 0 : i32
    %c0_i32_0 = arith.constant 0 : i32
    %c0_i32_1 = arith.constant 0 : i32
    return %c0_i32, %c0_i32_0 : i32, i32
  }
  func.func @transform_3(%arg0: i32) -> (i32, i32) {
    %c0_i32 = arith.constant 0 : i32
    %c0_i32_0 = arith.constant 0 : i32
    %c0_i32_1 = arith.constant 0 : i32
    return %c0_i32, %c0_i32_0 : i32, i32
  }
  func.func @transform_4(%arg0: i32) -> (i32, i32) {
    %c0_i32 = arith.constant 0 : i32
    %c0_i32_0 = arith.constant 0 : i32
    %c0_i32_1 = arith.constant 0 : i32
    return %c0_i32, %c0_i32_0 : i32, i32
  }
  func.func @transform_5(%arg0: i32) -> (i32, i32) {
    %c0_i32 = arith.constant 0 : i32
    %c0_i32_0 = arith.constant 0 : i32
    %c0_i32_1 = arith.constant 0 : i32
    return %c0_i32, %c0_i32_0 : i32, i32
  }
  func.func @transform_6(%arg0: i32) -> (i32, i32) {
    %c0_i32 = arith.constant 0 : i32
    %c0_i32_0 = arith.constant 0 : i32
    %c0_i32_1 = arith.constant 0 : i32
    return %c0_i32, %c0_i32_0 : i32, i32
  }
  func.func @transform_7(%arg0: i32) -> (i32, i32) {
    %c0_i32 = arith.constant 0 : i32
    %c0_i32_0 = arith.constant 0 : i32
    return %c0_i32, %arg0 : i32, i32
  }
}

</mosaic_0001>

<llo_original>
// kernel: tpu_custom_call.1
$region0: #{tpu_custom_call.1}
  #allocation0 [shape = 'u32[]', space=smem, size = 0x4, offset = 0x4, fixed_abs, tag = 'smem constant byte address 0x4 - core index']
  #allocation1 [shape = 'u32[144,128]{1,0:T(1,128)}', space=vmem, size = 0x12000, scoped, tag = 'internal scratch']
  %s0 = inlined_call_operand.vmem [shape: f32[128,15], index: 0, kind: input, shape index: {}]
  %s1 = inlined_call_operand.vmem [shape: f32[10,15], index: 1, kind: input, shape index: {}]
  %s2 = inlined_call_operand.vmem [shape: f32[10,1], index: 2, kind: input, shape index: {}]
  %s3 = inlined_call_operand.vmem [shape: f32[5,10], index: 3, kind: input, shape index: {}]
  %s4 = inlined_call_operand.vmem [shape: f32[5,1], index: 4, kind: input, shape index: {}]
  %s5 = inlined_call_operand.vmem [shape: f32[3,5], index: 5, kind: input, shape index: {}]
  %s6 = inlined_call_operand.vmem [shape: f32[3,1], index: 6, kind: input, shape index: {}]
  %s7 = inlined_call_operand.hbm [shape: f32[3,128], index: 7, kind: output, shape index: {}]
  %s8 = sld [smem:[#allocation0]]
  $region38: #{tpu_custom_call.1} parent=0
    _
  %s10 = ssub.s32 1, %s8
  %s11 = scalar_select 0, %s10, %s8
  $region1: #{tpu_custom_call.1} parent=0
    #allocation2 [shape = 'u8[2048]{0}', space=vmem, size = 0x800, scoped, tag = 'output window, operand 0, single buffered']
    #allocation3 [shape = 's32[1]{0}', space=sflag, size = 0x4, scoped, tag = 'scoped memory for tpu_custom_call.1']
    %12 = vsyncpa [#allocation3], 0
    // Predicated region
    $region2: #{tpu_custom_call.1} parent=1 // pred_check
      _
    $region3: #{tpu_custom_call.1} parent=1 // pred_check_branch
      %14 = sbr.rel (0) target = $region5
    $region4: #{tpu_custom_call.1} parent=1 // pred_region
      _
    $region5: #{tpu_custom_call.1} parent=1 // pred_fallthru
      _
    // Predicated region
    $region6: #{tpu_custom_call.1} parent=1 // pred_check
      _
    $region7: #{tpu_custom_call.1} parent=1 // pred_check_branch
      %16 = sbr.rel (0) target = $region9
    $region8: #{tpu_custom_call.1} parent=1 // pred_region
      _
    $region9: #{tpu_custom_call.1} parent=1 // pred_fallthru
      _
    // Predicated region
    $region10: #{tpu_custom_call.1} parent=1 // pred_check
      _
    $region11: #{tpu_custom_call.1} parent=1 // pred_check_branch
      %18 = sbr.rel (0) target = $region13
    $region12: #{tpu_custom_call.1} parent=1 // pred_region
      _
    $region13: #{tpu_custom_call.1} parent=1 // pred_fallthru
      _
    // Predicated region
    $region14: #{tpu_custom_call.1} parent=1 // pred_check
      _
    $region15: #{tpu_custom_call.1} parent=1 // pred_check_branch
      %20 = sbr.rel (0) target = $region17
    $region16: #{tpu_custom_call.1} parent=1 // pred_region
      _
    $region17: #{tpu_custom_call.1} parent=1 // pred_fallthru
      _
    // Predicated region
    $region18: #{tpu_custom_call.1} parent=1 // pred_check
      _
    $region19: #{tpu_custom_call.1} parent=1 // pred_check_branch
      %22 = sbr.rel (0) target = $region21
    $region20: #{tpu_custom_call.1} parent=1 // pred_region
      _
    $region21: #{tpu_custom_call.1} parent=1 // pred_fallthru
      _
    // Predicated region
    $region22: #{tpu_custom_call.1} parent=1 // pred_check
      _
    $region23: #{tpu_custom_call.1} parent=1 // pred_check_branch
      %24 = sbr.rel (0) target = $region25
    $region24: #{tpu_custom_call.1} parent=1 // pred_region
      _
    $region25: #{tpu_custom_call.1} parent=1 // pred_fallthru
      _
    // Predicated region
    $region26: #{tpu_custom_call.1} parent=1 // pred_check
      _
    $region27: #{tpu_custom_call.1} parent=1 // pred_check_branch
      %26 = sbr.rel (0) target = $region29
    $region28: #{tpu_custom_call.1} parent=1 // pred_region
      _
    $region29: #{tpu_custom_call.1} parent=1 // pred_fallthru
      _
    %v27 = vld [vmem:[%s0] sm:$0xff]
    %v28 = vld [vmem:[%s0 + $0x8] sm:$0xff]
    %v29 = vld [vmem:[%s0 + $0x10] sm:$0xff]
    %v30 = vld [vmem:[%s0 + $0x18] sm:$0xff]
    %v31 = vld [vmem:[%s0 + $0x20] sm:$0xff]
    %v32 = vld [vmem:[%s0 + $0x28] sm:$0xff]
    %v33 = vld [vmem:[%s0 + $0x30] sm:$0xff]
    %v34 = vld [vmem:[%s0 + $0x38] sm:$0xff]
    %v35 = vld [vmem:[%s0 + $0x40] sm:$0xff]
    %v36 = vld [vmem:[%s0 + $0x48] sm:$0xff]
    %v37 = vld [vmem:[%s0 + $0x50] sm:$0xff]
    %v38 = vld [vmem:[%s0 + $0x58] sm:$0xff]
    %v39 = vld [vmem:[%s0 + $0x60] sm:$0xff]
    %v40 = vld [vmem:[%s0 + $0x68] sm:$0xff]
    %v41 = vld [vmem:[%s0 + $0x70] sm:$0xff]
    %v42 = vld [vmem:[%s0 + $0x78] sm:$0xff]
    %v43 = vld [vmem:[%s1] sm:$0xff]
    %v44 = vld [vmem:[%s1 + $0x8] sm:$0x3]
    %v45 = vld [vmem:[%s2] sm:$0xff]
    %v46 = vld [vmem:[%s2 + $0x8] sm:$0x3]
    %48 = vset.pattern.permute.xlu0 0
    %49 = vperm.xlu0 %48, %v45
    %v50 = vpop.permute.xlu0 %49
    %53 = vset.pattern.permute.xlu0 0
    %54 = vperm.xlu0 %53, %v46
    %v55 = vpop.permute.xlu0 %54
    %vm57 = vcmask 121856
    %v59 = vsel %vm57, %v43, 0
    %v62 = vsel %vm57, %v44, 0
    %v65 = vsel %vm57, %v27, 0
    %v68 = vsel %vm57, %v28, 0
    %v71 = vsel %vm57, %v29, 0
    %v74 = vsel %vm57, %v30, 0
    %v77 = vsel %vm57, %v31, 0
    %v80 = vsel %vm57, %v32, 0
    %v83 = vsel %vm57, %v33, 0
    %v86 = vsel %vm57, %v34, 0
    %v89 = vsel %vm57, %v35, 0
    %v92 = vsel %vm57, %v36, 0
    %v95 = vsel %vm57, %v37, 0
    %v98 = vsel %vm57, %v38, 0
    %v101 = vsel %vm57, %v39, 0
    %v104 = vsel %vm57, %v40, 0
    %v107 = vsel %vm57, %v41, 0
    %v110 = vsel %vm57, %v42, 0
    %112 = vmatprep.subr.mxu0 0.0
    %113 = vmatpush1.xpose.msra.mxu0 %v65
    %114 = vmatprep.subr.mxu0 0.0
    %115 = vmatpush1.xpose.msra.mxu0 %v68
    %116 = vmatprep.subr.mxu0 0.0
    %117 = vmatpush1.xpose.msra.mxu0 %v71
    %118 = vmatprep.subr.mxu0 0.0
    %119 = vmatpush1.xpose.msra.mxu0 %v74
    %120 = vmatprep.subr.mxu0 0.0
    %121 = vmatpush1.xpose.msra.mxu0 %v77
    %122 = vmatprep.subr.mxu0 0.0
    %123 = vmatpush1.xpose.msra.mxu0 %v80
    %124 = vmatprep.subr.mxu0 0.0
    %125 = vmatpush1.xpose.msra.mxu0 %v83
    %126 = vmatprep.subr.mxu0 0.0
    %127 = vmatpush1.xpose.msra.mxu0 %v86
    %128 = vmatprep.subr.mxu0 0.0
    %129 = vmatpush1.xpose.msra.mxu0 %v89
    %130 = vmatprep.subr.mxu0 0.0
    %131 = vmatpush1.xpose.msra.mxu0 %v92
    %132 = vmatprep.subr.mxu0 0.0
    %133 = vmatpush1.xpose.msra.mxu0 %v95
    %134 = vmatprep.subr.mxu0 0.0
    %135 = vmatpush1.xpose.msra.mxu0 %v98
    %136 = vmatprep.subr.mxu0 0.0
    %137 = vmatpush1.xpose.msra.mxu0 %v101
    %138 = vmatprep.subr.mxu0 0.0
    %139 = vmatpush1.xpose.msra.mxu0 %v104
    %140 = vmatprep.subr.mxu0 0.0
    %141 = vmatpush1.xpose.msra.mxu0 %v107
    %142 = vmatprep.subr.mxu0 0.0
    %143 = vmatpush1.xpose.msra.mxu0 %v110
    %144 = vmatprep.subr.mxu0 0.0
    %145 = vmatpush1.xpose.msra.mxu0 0.0
    %146 = vmatprep.subr.mxu0 0.0
    %147 = vmatpush1.xpose.msra.mxu0 0.0
    %148 = vmatprep.subr.mxu0 0.0
    %149 = vmatpush1.xpose.msra.mxu0 0.0
    %150 = vmatprep.subr.mxu0 0.0
    %151 = vmatpush1.xpose.msra.mxu0 0.0
    %152 = vmatprep.subr.mxu0 0.0
    %153 = vmatpush1.xpose.msra.mxu0 0.0
    %154 = vmatprep.subr.mxu0 0.0
    %155 = vmatpush1.xpose.msra.mxu0 0.0
    %156 = vmatprep.subr.mxu0 0.0
    %157 = vmatpush1.xpose.msra.mxu0 0.0
    %158 = vmatprep.subr.mxu0 0.0
    %159 = vmatpush1.xpose.msra.mxu0 0.0
    %160 = vmatprep.subr.mxu0 0.0
    %161 = vmatpush1.xpose.msra.mxu0 0.0
    %162 = vmatprep.subr.mxu0 0.0
    %163 = vmatpush1.xpose.msra.mxu0 0.0
    %164 = vmatprep.subr.mxu0 0.0
    %165 = vmatpush1.xpose.msra.mxu0 0.0
    %166 = vmatprep.subr.mxu0 0.0
    %167 = vmatpush1.xpose.msra.mxu0 0.0
    %168 = vmatprep.subr.mxu0 0.0
    %169 = vmatpush1.xpose.msra.mxu0 0.0
    %170 = vmatprep.subr.mxu0 0.0
    %171 = vmatpush1.xpose.msra.mxu0 0.0
    %172 = vmatprep.subr.mxu0 0.0
    %173 = vmatpush1.xpose.msra.mxu0 0.0
    %174 = vmatprep.subr.mxu0 0.0
    %175 = vmatpush1.xpose.msra.mxu0 0.0
    %176 = vmatprep.mubr.f32.mxu0 0.0
    %177 = vmatmul.mubr.f32.gmra.mrb[0].mxu0 %v59
    %v178 = vpop.f32.mrb[0].mxu0
    %v179 = vadd.f32 %v50, %v178
    %v180 = vpop.f32.mrb[0].mxu0
    %181 = vmatprep.mubr.f32.mxu0 0.0
    %182 = vmatmul.mubr.f32.gmra.mrb[0].mxu0 %v62
    %v183 = vpop.f32.mrb[0].mxu0
    %v184 = vadd.f32 %v55, %v183
    %v185 = vpop.f32.mrb[0].mxu0
    %186 = vdwg.mxu0
    %v187 = vmax.f32 %v179, 0.0
    %v188 = vmax.f32 %v184, 0.0
    %v189 = vld [vmem:[%s3] sm:$0x1f]
    %v190 = vld [vmem:[%s4] sm:$0x1f]
    %192 = vset.pattern.permute.xlu0 0
    %193 = vperm.xlu0 %192, %v190
    %v194 = vpop.permute.xlu0 %193
    %vm196 = vcmask 80896
    %v198 = vsel %vm196, %v189, 0
    %vm200 = vcmask 1041408
    %v202 = vsel %vm200, %v188, 0
    %204 = vmatprep.subr.mxu0 0.0
    %205 = vmatpush1.msra.mxu0 %v187
    %206 = vmatprep.subr.mxu0 0.0
    %207 = vmatpush1.msra.mxu0 %v202
    %208 = vmatprep.subr.mxu0 0.0
    %209 = vmatpush1.msra.mxu0 0.0
    %210 = vmatprep.subr.mxu0 0.0
    %211 = vmatpush1.msra.mxu0 0.0
    %212 = vmatprep.subr.mxu0 0.0
    %213 = vmatpush1.msra.mxu0 0.0
    %214 = vmatprep.subr.mxu0 0.0
    %215 = vmatpush1.msra.mxu0 0.0
    %216 = vmatprep.subr.mxu0 0.0
    %217 = vmatpush1.msra.mxu0 0.0
    %218 = vmatprep.subr.mxu0 0.0
    %219 = vmatpush1.msra.mxu0 0.0
    %220 = vmatprep.subr.mxu0 0.0
    %221 = vmatpush1.msra.mxu0 0.0
    %222 = vmatprep.subr.mxu0 0.0
    %223 = vmatpush1.msra.mxu0 0.0
    %224 = vmatprep.subr.mxu0 0.0
    %225 = vmatpush1.msra.mxu0 0.0
    %226 = vmatprep.subr.mxu0 0.0
    %227 = vmatpush1.msra.mxu0 0.0
    %228 = vmatprep.subr.mxu0 0.0
    %229 = vmatpush1.msra.mxu0 0.0
    %230 = vmatprep.subr.mxu0 0.0
    %231 = vmatpush1.msra.mxu0 0.0
    %232 = vmatprep.subr.mxu0 0.0
    %233 = vmatpush1.msra.mxu0 0.0
    %234 = vmatprep.subr.mxu0 0.0
    %235 = vmatpush1.msra.mxu0 0.0
    %236 = vmatprep.subr.mxu0 0.0
    %237 = vmatpush1.msra.mxu0 0.0
    %238 = vmatprep.subr.mxu0 0.0
    %239 = vmatpush1.msra.mxu0 0.0
    %240 = vmatprep.subr.mxu0 0.0
    %241 = vmatpush1.msra.mxu0 0.0
    %242 = vmatprep.subr.mxu0 0.0
    %243 = vmatpush1.msra.mxu0 0.0
    %244 = vmatprep.subr.mxu0 0.0
    %245 = vmatpush1.msra.mxu0 0.0
    %246 = vmatprep.subr.mxu0 0.0
    %247 = vmatpush1.msra.mxu0 0.0
    %248 = vmatprep.subr.mxu0 0.0
    %249 = vmatpush1.msra.mxu0 0.0
    %250 = vmatprep.subr.mxu0 0.0
    %251 = vmatpush1.msra.mxu0 0.0
    %252 = vmatprep.subr.mxu0 0.0
    %253 = vmatpush1.msra.mxu0 0.0
    %254 = vmatprep.subr.mxu0 0.0
    %255 = vmatpush1.msra.mxu0 0.0
    %256 = vmatprep.subr.mxu0 0.0
    %257 = vmatpush1.msra.mxu0 0.0
    %258 = vmatprep.subr.mxu0 0.0
    %259 = vmatpush1.msra.mxu0 0.0
    %260 = vmatprep.subr.mxu0 0.0
    %261 = vmatpush1.msra.mxu0 0.0
    %262 = vmatprep.subr.mxu0 0.0
    %263 = vmatpush1.msra.mxu0 0.0
    %264 = vmatprep.subr.mxu0 0.0
    %265 = vmatpush1.msra.mxu0 0.0
    %266 = vmatprep.subr.mxu0 0.0
    %267 = vmatpush1.msra.mxu0 0.0
    %268 = vmatprep.mubr.f32.mxu0 0.0
    %269 = vmatmul.mubr.f32.gmra.mrb[0].mxu0 %v198
    %v270 = vpop.f32.mrb[0].mxu0
    %v271 = vadd.f32 %v194, %v270
    %v272 = vpop.f32.mrb[0].mxu0
    %273 = vdwg.mxu0
    %v274 = vmax.f32 %v271, 0.0
    %v275 = vld [vmem:[%s5] sm:$0x7]
    %v276 = vld [vmem:[%s6] sm:$0x7]
    %278 = vset.pattern.permute.xlu0 0
    %279 = vperm.xlu0 %278, %v276
    %v280 = vpop.permute.xlu0 %279
    %vm282 = vcmask 39936
    %v284 = vsel %vm282, %v275, 0
    %vm286 = vcmask 1044480
    %v288 = vsel %vm286, %v274, 0
    %290 = vmatprep.subr.mxu0 0.0
    %291 = vmatpush1.msra.mxu0 %v288
    %292 = vmatprep.subr.mxu0 0.0
    %293 = vmatpush1.msra.mxu0 0.0
    %294 = vmatprep.subr.mxu0 0.0
    %295 = vmatpush1.msra.mxu0 0.0
    %296 = vmatprep.subr.mxu0 0.0
    %297 = vmatpush1.msra.mxu0 0.0
    %298 = vmatprep.subr.mxu0 0.0
    %299 = vmatpush1.msra.mxu0 0.0
    %300 = vmatprep.subr.mxu0 0.0
    %301 = vmatpush1.msra.mxu0 0.0
    %302 = vmatprep.subr.mxu0 0.0
    %303 = vmatpush1.msra.mxu0 0.0
    %304 = vmatprep.subr.mxu0 0.0
    %305 = vmatpush1.msra.mxu0 0.0
    %306 = vmatprep.subr.mxu0 0.0
    %307 = vmatpush1.msra.mxu0 0.0
    %308 = vmatprep.subr.mxu0 0.0
    %309 = vmatpush1.msra.mxu0 0.0
    %310 = vmatprep.subr.mxu0 0.0
    %311 = vmatpush1.msra.mxu0 0.0
    %312 = vmatprep.subr.mxu0 0.0
    %313 = vmatpush1.msra.mxu0 0.0
    %314 = vmatprep.subr.mxu0 0.0
    %315 = vmatpush1.msra.mxu0 0.0
    %316 = vmatprep.subr.mxu0 0.0
    %317 = vmatpush1.msra.mxu0 0.0
    %318 = vmatprep.subr.mxu0 0.0
    %319 = vmatpush1.msra.mxu0 0.0
    %320 = vmatprep.subr.mxu0 0.0
    %321 = vmatpush1.msra.mxu0 0.0
    %322 = vmatprep.subr.mxu0 0.0
    %323 = vmatpush1.msra.mxu0 0.0
    %324 = vmatprep.subr.mxu0 0.0
    %325 = vmatpush1.msra.mxu0 0.0
    %326 = vmatprep.subr.mxu0 0.0
    %327 = vmatpush1.msra.mxu0 0.0
    %328 = vmatprep.subr.mxu0 0.0
    %329 = vmatpush1.msra.mxu0 0.0
    %330 = vmatprep.subr.mxu0 0.0
    %331 = vmatpush1.msra.mxu0 0.0
    %332 = vmatprep.subr.mxu0 0.0
    %333 = vmatpush1.msra.mxu0 0.0
    %334 = vmatprep.subr.mxu0 0.0
    %335 = vmatpush1.msra.mxu0 0.0
    %336 = vmatprep.subr.mxu0 0.0
    %337 = vmatpush1.msra.mxu0 0.0
    %338 = vmatprep.subr.mxu0 0.0
    %339 = vmatpush1.msra.mxu0 0.0
    %340 = vmatprep.subr.mxu0 0.0
    %341 = vmatpush1.msra.mxu0 0.0
    %342 = vmatprep.subr.mxu0 0.0
    %343 = vmatpush1.msra.mxu0 0.0
    %344 = vmatprep.subr.mxu0 0.0
    %345 = vmatpush1.msra.mxu0 0.0
    %346 = vmatprep.subr.mxu0 0.0
    %347 = vmatpush1.msra.mxu0 0.0
    %348 = vmatprep.subr.mxu0 0.0
    %349 = vmatpush1.msra.mxu0 0.0
    %350 = vmatprep.subr.mxu0 0.0
    %351 = vmatpush1.msra.mxu0 0.0
    %352 = vmatprep.subr.mxu0 0.0
    %353 = vmatpush1.msra.mxu0 0.0
    %354 = vmatprep.mubr.f32.mxu0 0.0
    %355 = vmatmul.mubr.f32.gmra.mrb[0].mxu0 %v284
    %v356 = vpop.f32.mrb[0].mxu0
    %v357 = vadd.f32 %v280, %v356
    %v358 = vpop.f32.mrb[0].mxu0
    %359 = vdwg.mxu0
    %360 = vst [vmem:[#allocation2] sm:$0x7] %v357
    // Predicated region
    $region30: #{tpu_custom_call.1} parent=1 // pred_check
      _
    $region31: #{tpu_custom_call.1} parent=1 // pred_check_branch
      %362 = sbr.rel (0) target = $region33
    $region32: #{tpu_custom_call.1} parent=1 // pred_region
      %s364 = ssub.s32 64, 64
      %365 = vsyncadd [#allocation3], %s364
      %s367 = sshll.u32 [#allocation2], 4
      %s368 = int_to_ptr.vmem [resolvable:$true] %s367
      %370 = dma.vmem_to_hbm [thread:$0]  %s368, 64, %s7, [#allocation3]
    $region33: #{tpu_custom_call.1} parent=1 // pred_fallthru
      _
    // Predicated region
    $region34: #{tpu_custom_call.1} parent=1 // pred_check
      _
    $region35: #{tpu_custom_call.1} parent=1 // pred_check_branch
      %372 = sbr.rel (0) target = $region37
    $region36: #{tpu_custom_call.1} parent=1 // pred_region
      %373 = dma.done [#allocation3], 64
    $region37: #{tpu_custom_call.1} parent=1 // pred_fallthru
      _
    %374 = vsyncpa [#allocation3], 1

</llo_original>
